<compile_context>
chip_gen: v5e
topology: v5e:2x2
jax: 0.10.0
libtpu: 0.0.40
codegen_flags: <defaults>
</compile_context>

<pallas_src>
import functools

import jax
import jax.numpy as jnp
from jax.experimental import pallas as pl
from jax.experimental.pallas import tpu as pltpu

IGNORE_INDEX = -100


def _gumbel_ce_kernel(cls_ref, label_ref, pred_ref, out_ref, *,
                      C, g, n_rows, ignore_index, has_tail):
    """One grid step: weighted Gumbel-BCE partial sum over a (tile_n, g*C) block."""
    i = pl.program_id(0)
    tile_n, W = pred_ref.shape            # W == g * C  (<= 128 when lane-packed)

    # ---- Gumbel-CDF BCE math (EUP-bound: 3 f32 transcendentals / element). ----
    x = jnp.clip(pred_ref[...].astype(jnp.float32), -4.0, 10.0)   # in-kernel upcast
    e = jnp.exp(-x)                       # == -log(pestim)
    p = jnp.exp(-e)                       # pestim = exp(-exp(-x))
    nlog_1mp = -jnp.log1p(-p)             # == -log(1 - pestim); matches reference numerics
    # TODO(synk): bf16 EUP math would ~2x v6e/v7x transcendental throughput but
    # breaks 1e-5 parity with the f32 reference; kept in f32.

    # ---- Masks: expand labels to a per-column map, then O(1) vector compares. ----
    lab = label_ref[...]                  # (tile_n, g) int32
    cls = cls_ref[...]                    # (1, W) int32: column -> class index (arange % C)
    if g == 1:
        lab_col = lab                     # (tile_n, 1) -> lane-broadcasts in compares
    else:
        j = jax.lax.broadcasted_iota(jnp.int32, (tile_n, W), 1)
        lab_col = jnp.broadcast_to(lab[:, 0:1], (tile_n, W))
        for q in range(1, g):             # static, <= 128//C - 1 iters, ~2 ops each
            lab_col = jnp.where(j >= q * C, lab[:, q:q + 1], lab_col)

    # cls values lie in [0, C), so lab_col == cls already implies 0 <= lab_col < C.
    onehot = lab_col == cls
    valid = lab_col >= 0                  # ignore_index = -100 is covered by >= 0
    if ignore_index >= 0:
        not_ign = lab_col != ignore_index
        onehot = onehot & not_ign
        valid = valid & not_ign

    bce = jnp.where(onehot, e, nlog_1mp)

    def _partial(mask):
        # Select (not multiply) so NaN/Inf from padded/garbage rows are dropped.
        return jnp.sum(jnp.where(mask, bce, 0.0))

    # Independent per-block partial sum -> no cross-step dependence; the row mask
    # for the (possibly) partial last tile only runs on the final block.
    if has_tail:
        last = pl.num_programs(0) - 1

        @pl.when(i != last)
        def _():
            out_ref[0, 0] = _partial(valid)

        @pl.when(i == last)
        def _():
            row = jax.lax.broadcasted_iota(jnp.int32, (tile_n, W), 0) + i * tile_n
            out_ref[0, 0] = _partial(valid & (row < n_rows))
    else:
        out_ref[0, 0] = _partial(valid)


def _pick_group(N, C):
    """Largest g with g*C <= 128 and g | N (avoids any host-side pad copy of pred)."""
    if C > 128:
        return 1
    for g in range(128 // C, 0, -1):
        if N % g == 0:
            return g
    return 1


def gumbel_ce_loss(cls_score, label, loss_weight=1.0, ignore_index=IGNORE_INDEX,
                   tile_rows=None):
    """GumbelCE.forward with reduction='mean' (the module default)."""
    # TODO(synk): reduction='none'/'sum', sample weights, class_weight and
    # avg_factor (all None/default in the module) are not implemented here.
    ignore_index = IGNORE_INDEX if ignore_index is None else ignore_index
    N, C = cls_score.shape

    # Lane-dense packing: fold g consecutive samples into one (g*C)-lane row.
    g = _pick_group(N, C)
    n_rows = N // g
    W = g * C

    pred = cls_score.reshape(n_rows, W)                    # row-major view of same data
    label2d = label.astype(jnp.int32).reshape(n_rows, g)
    cls_row = (jnp.arange(W, dtype=jnp.int32) % C).reshape(1, W)

    # ---- Generation-aware tile sizing (VMEM budget). ----
    try:
        vmem_cap = int(pltpu.get_tpu_info().vmem_capacity_bytes)
    except Exception:
        vmem_cap = 64 * 1024 * 1024                        # conservative (v7x per-TC)
    # Scoped VMEM requested from Mosaic: half the core's VMEM, clamped to
    # [32, 64] MiB (v5e/v6e: 64 of 128 MiB; v7x: 32 of its 64 MiB per TensorCore).
    vmem_limit = int(min(64 << 20, max(32 << 20, vmem_cap // 2)))

    pred_itemsize = jnp.dtype(cls_score.dtype).itemsize
    # Per packed row: ~LIVE full-width f32/i32 intermediates + double-buffered
    # native-dtype pred block + double-buffered label block (lane-padded to 128).
    LIVE = 10
    per_row_bytes = LIVE * W * 4 + 2 * (W * pred_itemsize + 128 * 4)
    cap = max(8, int(0.7 * vmem_limit) // per_row_bytes // 8 * 8)

    tile_n = cap if tile_rows is None else min(int(tile_rows), cap)
    tile_n = min(tile_n, n_rows)
    if tile_n < n_rows:
        tile_n = max(8, (tile_n // 8) * 8)                 # sublane alignment for tiled blocks
    grid_n = pl.cdiv(n_rows, tile_n)
    has_tail = (n_rows % tile_n) != 0

    kernel = functools.partial(
        _gumbel_ce_kernel, C=C, g=g, n_rows=n_rows,
        ignore_index=ignore_index, has_tail=has_tail)

    partials = pl.pallas_call(
        kernel,
        out_shape=jax.ShapeDtypeStruct((grid_n, 1), jnp.float32),
        grid_spec=pltpu.PrefetchScalarGridSpec(
            num_scalar_prefetch=0,
            grid=(grid_n,),
            in_specs=[
                pl.BlockSpec((1, W), lambda i: (0, 0)),        # class-index row (tiny)
                pl.BlockSpec((tile_n, g), lambda i: (i, 0)),   # labels
                pl.BlockSpec((tile_n, W), lambda i: (i, 0)),   # logits (native dtype)
            ],
            out_specs=pl.BlockSpec(
                (1, 1), lambda i: (i, 0),
                memory_space=pltpu.MemorySpace.SMEM),
        ),
        # Each block writes an independent partial sum -> no cross-step carry.
        # TODO(synk): on v7x, switch this axis to pltpu.CORE_PARALLEL if a trace
        # shows a single TensorCore executing all grid steps.
        compiler_params=pltpu.CompilerParams(
            dimension_semantics=("parallel",),
            vmem_limit_bytes=vmem_limit),
        cost_estimate=pl.CostEstimate(
            flops=12 * n_rows * W,
            transcendentals=3 * n_rows * W,
            bytes_accessed=(pred.size * pred_itemsize
                            + label2d.size * 4 + W * 4 + grid_n * 4)),
    )(cls_row, label2d, pred)

    total = jnp.sum(partials)
    mean_loss = total / jnp.float32(N * C)                 # 'mean', avg_factor=None
    mean_loss = jnp.clip(mean_loss, 0.0, 20.0)
    return loss_weight * mean_loss


def _reference_loss(cls_score, label, loss_weight=1.0, ignore_index=IGNORE_INDEX):
    """Pure-JAX mirror of the PyTorch forward for validation."""
    N, C = cls_score.shape
    lab = label.astype(jnp.int32).reshape(N, 1)
    valid = (lab >= 0) & (lab != ignore_index)
    col = jnp.arange(C, dtype=jnp.int32)[None, :]
    onehot = ((lab == col) & valid & (lab < C)).astype(jnp.float32)
    w = jnp.broadcast_to(valid.astype(jnp.float32), (N, C))
    x = jnp.clip(cls_score.astype(jnp.float32), -4.0, 10.0)
    p = jnp.exp(-jnp.exp(-x))
    loss = -(onehot * jnp.log(p) + (1.0 - onehot) * jnp.log1p(-p))
    loss = (loss * w).mean()
    loss = jnp.clip(loss, 0.0, 20.0)
    return loss_weight * loss


if __name__ == "__main__":
    key = jax.random.PRNGKey(0)

    def check(N, C, tile_rows=None, seed_split=0, dtype=jnp.float32):
        k1, k2 = jax.random.split(jax.random.fold_in(key, seed_split))
        cls_score = jax.random.normal(k1, (N, C), dtype=dtype) * 3.0
        label = jax.random.randint(k2, (N,), 0, C, dtype=jnp.int32)
        label = label.at[min(3, N - 1)].set(IGNORE_INDEX)   # ignored sample
        label = label.at[0].set(C)                          # valid but out-of-range class
        out = gumbel_ce_loss(cls_score, label, loss_weight=1.0, tile_rows=tile_rows)
        out = jax.block_until_ready(out)
        ref = _reference_loss(cls_score, label, loss_weight=1.0)
        assert jnp.allclose(out, ref, atol=1e-5, rtol=1e-5), (N, C, out, ref)

    # Lane-packed path (C=32 -> g=4, full 128-lane rows), single block.
    check(16, 32, seed_split=0)
    # Multiple grid steps + partial last tile (pl.when-gated row mask).
    check(36, 32, tile_rows=8, seed_split=1)
    # Non-power-of-two C that still packs (C=48 -> g=2, 96-lane rows).
    check(24, 48, seed_split=2)
    # Small C (C=20 -> g=6, 120 lanes): exercises the where-cascade expansion.
    check(30, 20, seed_split=3)
    # Wide head (C > 128 -> g=1, unpacked path).
    check(16, 150, seed_split=4)
    # Native bf16 logits (in-kernel upcast, no wrapper cast).
    check(16, 32, seed_split=5, dtype=jnp.bfloat16)

    print("KERNEL_OK")
</pallas_src>

<mosaic_0001>
module attributes {stable_mosaic.version = 11 : i64} {
  func.func @_gumbel_ce_kernel(%arg0: i32, %arg1: memref<1x128xi32, #tpu.memory_space<vmem>>, %arg2: memref<4x4xi32, #tpu.memory_space<vmem>>, %arg3: memref<4x128xf32, #tpu.memory_space<vmem>>, %arg4: memref<1x1xf32, #tpu.memory_space<smem>>) attributes {dimension_semantics = [#tpu.dimension_semantics<parallel>], iteration_bounds = array<i64: 1>, scalar_prefetch = 0 : i64, scratch_operands = 0 : i64, tpu.core_type = #tpu.core_type<tc>, window_params = [{pipeline_mode = #tpu.pipeline_mode<synchronous>, transform_indices = @transform_0, window_bounds = array<i64: 1, 128>}, {transform_indices = @transform_1, window_bounds = array<i64: 4, 4>}, {transform_indices = @transform_2, window_bounds = array<i64: 4, 128>}, {transform_indices = @transform_3, window_bounds = array<i64: 1, 1>}]} {
    %c0 = arith.constant 0 : index
    %c0_0 = arith.constant 0 : index
    %0 = vector.load %arg3[%c0, %c0_0] : memref<4x128xf32, #tpu.memory_space<vmem>>, vector<4x128xf32>
    %cst = arith.constant -4.000000e+00 : f32
    %cst_1 = arith.constant 1.000000e+01 : f32
    %1 = vector.broadcast %cst : f32 to vector<4x128xf32>
    %2 = arith.maximumf %1, %0 : vector<4x128xf32>
    %3 = vector.broadcast %cst_1 : f32 to vector<4x128xf32>
    %4 = arith.minimumf %3, %2 : vector<4x128xf32>
    %cst_2 = arith.constant 0.000000e+00 : f32
    %5 = vector.broadcast %cst_2 : f32 to vector<4x128xf32>
    %6 = arith.subf %5, %4 : vector<4x128xf32>
    %7 = math.exp %6 : vector<4x128xf32>
    %cst_3 = arith.constant 0.000000e+00 : f32
    %8 = vector.broadcast %cst_3 : f32 to vector<4x128xf32>
    %9 = arith.subf %8, %7 : vector<4x128xf32>
    %10 = math.exp %9 : vector<4x128xf32>
    %cst_4 = arith.constant 0.000000e+00 : f32
    %11 = vector.broadcast %cst_4 : f32 to vector<4x128xf32>
    %12 = arith.subf %11, %10 : vector<4x128xf32>
    %13 = math.log1p %12 : vector<4x128xf32>
    %cst_5 = arith.constant 0.000000e+00 : f32
    %14 = vector.broadcast %cst_5 : f32 to vector<4x128xf32>
    %15 = arith.subf %14, %13 : vector<4x128xf32>
    %c0_6 = arith.constant 0 : index
    %c0_7 = arith.constant 0 : index
    %16 = vector.load %arg2[%c0_6, %c0_7] : memref<4x4xi32, #tpu.memory_space<vmem>>, vector<4x4xi32>
    %c0_8 = arith.constant 0 : index
    %c0_9 = arith.constant 0 : index
    %17 = vector.load %arg1[%c0_8, %c0_9] : memref<1x128xi32, #tpu.memory_space<vmem>>, vector<1x128xi32>
    %18 = tpu.iota {dimensions = array<i32: 1>} : vector<4x128xi32>
    %19 = vector.extract_strided_slice %16 {offsets = [0, 0], sizes = [4, 1], strides = [1, 1]} : vector<4x4xi32> to vector<4x1xi32>
    %20 = vector.shape_cast %19 : vector<4x1xi32> to vector<4x1xi32>
    %21 = vector.broadcast %20 : vector<4x1xi32> to vector<4x128xi32>
    %c32_i32 = arith.constant 32 : i32
    %22 = vector.broadcast %c32_i32 : i32 to vector<4x128xi32>
    %23 = arith.cmpi sge, %18, %22 : vector<4x128xi32>
    %24 = vector.extract_strided_slice %16 {offsets = [0, 1], sizes = [4, 1], strides = [1, 1]} : vector<4x4xi32> to vector<4x1xi32>
    %25 = vector.shape_cast %24 : vector<4x1xi32> to vector<4x1xi32>
    %26 = vector.broadcast %25 : vector<4x1xi32> to vector<4x128xi32>
    %27 = arith.select %23, %26, %21 : vector<4x128xi1>, vector<4x128xi32>
    %c64_i32 = arith.constant 64 : i32
    %28 = vector.broadcast %c64_i32 : i32 to vector<4x128xi32>
    %29 = arith.cmpi sge, %18, %28 : vector<4x128xi32>
    %30 = vector.extract_strided_slice %16 {offsets = [0, 2], sizes = [4, 1], strides = [1, 1]} : vector<4x4xi32> to vector<4x1xi32>
    %31 = vector.shape_cast %30 : vector<4x1xi32> to vector<4x1xi32>
    %32 = vector.broadcast %31 : vector<4x1xi32> to vector<4x128xi32>
    %33 = arith.select %29, %32, %27 : vector<4x128xi1>, vector<4x128xi32>
    %c96_i32 = arith.constant 96 : i32
    %34 = vector.broadcast %c96_i32 : i32 to vector<4x128xi32>
    %35 = arith.cmpi sge, %18, %34 : vector<4x128xi32>
    %36 = vector.extract_strided_slice %16 {offsets = [0, 3], sizes = [4, 1], strides = [1, 1]} : vector<4x4xi32> to vector<4x1xi32>
    %37 = vector.shape_cast %36 : vector<4x1xi32> to vector<4x1xi32>
    %38 = vector.broadcast %37 : vector<4x1xi32> to vector<4x128xi32>
    %39 = arith.select %35, %38, %33 : vector<4x128xi1>, vector<4x128xi32>
    %40 = vector.broadcast %17 : vector<1x128xi32> to vector<4x128xi32>
    %41 = arith.cmpi eq, %39, %40 : vector<4x128xi32>
    %c0_i32 = arith.constant 0 : i32
    %42 = vector.broadcast %c0_i32 : i32 to vector<4x128xi32>
    %43 = arith.cmpi sge, %39, %42 : vector<4x128xi32>
    %44 = arith.select %41, %7, %15 : vector<4x128xi1>, vector<4x128xf32>
    %cst_10 = arith.constant 0.000000e+00 : f32
    %45 = vector.broadcast %cst_10 : f32 to vector<4x128xf32>
    %46 = arith.select %43, %44, %45 : vector<4x128xi1>, vector<4x128xf32>
    %47 = vector.shape_cast %46 : vector<4x128xf32> to vector<1x4x128xf32>
    %cst_11 = arith.constant dense<0.000000e+00> : vector<1xf32>
    %48 = vector.multi_reduction <add>, %47, %cst_11 [1, 2] : vector<1x4x128xf32> to vector<1xf32>
    %49 = vector.shape_cast %48 : vector<1xf32> to vector<1x1x1xf32>
    %50 = vector.extract %49[0, 0, 0] : f32 from vector<1x1x1xf32>
    %c0_12 = arith.constant 0 : index
    %c0_13 = arith.constant 0 : index
    %51 = memref.load %arg4[%c0_12, %c0_13] : memref<1x1xf32, #tpu.memory_space<smem>>
    memref.store %50, %arg4[%c0_12, %c0_13] : memref<1x1xf32, #tpu.memory_space<smem>>
    return
  }
  func.func @transform_0(%arg0: i32) -> (i32, i32) {
    %c0_i32 = arith.constant 0 : i32
    %c0_i32_0 = arith.constant 0 : i32
    %c0_i32_1 = arith.constant 0 : i32
    return %c0_i32, %c0_i32_0 : i32, i32
  }
  func.func @transform_1(%arg0: i32) -> (i32, i32) {
    %c0_i32 = arith.constant 0 : i32
    %c0_i32_0 = arith.constant 0 : i32
    return %arg0, %c0_i32 : i32, i32
  }
  func.func @transform_2(%arg0: i32) -> (i32, i32) {
    %c0_i32 = arith.constant 0 : i32
    %c0_i32_0 = arith.constant 0 : i32
    return %arg0, %c0_i32 : i32, i32
  }
  func.func @transform_3(%arg0: i32) -> (i32, i32) {
    %c0_i32 = arith.constant 0 : i32
    %c0_i32_0 = arith.constant 0 : i32
    return %arg0, %c0_i32 : i32, i32
  }
}

</mosaic_0001>

<llo_original>
// kernel: tpu_custom_call.1
$region0: #{tpu_custom_call.1}
  #allocation0 [shape = 'u32[]', space=smem, size = 0x4, offset = 0x4, fixed_abs, tag = 'smem constant byte address 0x4 - core index']
  #allocation1 [shape = 'u32[72,128]{1,0:T(1,128)}', space=vmem, size = 0x9000, scoped, tag = 'internal scratch']
  %s0 = inlined_call_operand.hbm [shape: s32[1,128], index: 0, kind: input, shape index: {}]
  %s1 = inlined_call_operand.hbm [shape: s32[4,4], index: 1, kind: input, shape index: {}]
  %s2 = inlined_call_operand.hbm [shape: f32[4,128], index: 2, kind: input, shape index: {}]
  %s3 = inlined_call_operand.hbm [shape: f32[1,1], index: 3, kind: output, shape index: {}]
  %s4 = sld [smem:[#allocation0]]
  $region34: #{tpu_custom_call.1} parent=0
    _
  %s6 = ssub.s32 1, %s4
  %s7 = scalar_select 0, %s6, %s4
  $region1: #{tpu_custom_call.1} parent=0
    #allocation2 [shape = 'u8[512]{0}', space=vmem, size = 0x400, scoped, tag = 'input window, operand 0, single buffered']
    #allocation3 [shape = 's32[1]{0}', space=sflag, size = 0x4, scoped, tag = 'scoped memory for tpu_custom_call.1']
    #allocation4 [shape = 's32[1]{0}', space=sflag, size = 0x4, scoped, tag = 'scoped memory for tpu_custom_call.1']
    #allocation5 [shape = 'u8[2048]{0}', space=vmem, size = 0x800, scoped, tag = 'input window, operand 1, single buffered']
    #allocation6 [shape = 's32[1]{0}', space=sflag, size = 0x4, scoped, tag = 'scoped memory for tpu_custom_call.1']
    #allocation7 [shape = 'u8[2048]{0}', space=vmem, size = 0x800, scoped, tag = 'input window, operand 2, single buffered']
    #allocation8 [shape = 'u8[512]{0}', space=smem, size = 0x200, scoped, tag = 'output window, operand 0, single buffered']
    %8 = vsyncpa [#allocation3], 0
    %9 = vsyncpa [#allocation6], 0
    %10 = vsyncpa [#allocation4], 0
    // Predicated region
    $region2: #{tpu_custom_call.1} parent=1 // pred_check
      _
    $region3: #{tpu_custom_call.1} parent=1 // pred_check_branch
      %12 = sbr.rel (0) target = $region5
    $region4: #{tpu_custom_call.1} parent=1 // pred_region
      %14 = vsyncadd [#allocation3], 0
      %s16 = sshll.u32 %s0, 4
      %s17 = int_to_ptr.hbm [resolvable:$true] %s16
      %s18 = sshll.u32 [#allocation2], 4
      %s19 = int_to_ptr.vmem [resolvable:$true] %s18
      %21 = dma.hbm_to_vmem [thread:$0]  %s17, 16, %s19, [#allocation3]
    $region5: #{tpu_custom_call.1} parent=1 // pred_fallthru
      _
    // Predicated region
    $region6: #{tpu_custom_call.1} parent=1 // pred_check
      _
    $region7: #{tpu_custom_call.1} parent=1 // pred_check_branch
      %23 = sbr.rel (0) target = $region9
    $region8: #{tpu_custom_call.1} parent=1 // pred_region
      %25 = vsyncadd [#allocation6], 0
      %s27 = sshll.u32 %s1, 4
      %s28 = int_to_ptr.hbm [resolvable:$true] %s27
      %s29 = sshll.u32 [#allocation5], 4
      %s30 = int_to_ptr.vmem [resolvable:$true] %s29
      %32 = dma.hbm_to_vmem [thread:$0]  %s28, 64, %s30, [#allocation6]
    $region9: #{tpu_custom_call.1} parent=1 // pred_fallthru
      _
    // Predicated region
    $region10: #{tpu_custom_call.1} parent=1 // pred_check
      _
    $region11: #{tpu_custom_call.1} parent=1 // pred_check_branch
      %34 = sbr.rel (0) target = $region13
    $region12: #{tpu_custom_call.1} parent=1 // pred_region
      %36 = vsyncadd [#allocation6], 0
      %s38 = sshll.u32 %s2, 4
      %s39 = int_to_ptr.hbm [resolvable:$true] %s38
      %s40 = sshll.u32 [#allocation7], 4
      %s41 = int_to_ptr.vmem [resolvable:$true] %s40
      %43 = dma.hbm_to_vmem [thread:$0]  %s39, 64, %s41, [#allocation6]
    $region13: #{tpu_custom_call.1} parent=1 // pred_fallthru
      _
    // Predicated region
    $region14: #{tpu_custom_call.1} parent=1 // pred_check
      _
    $region15: #{tpu_custom_call.1} parent=1 // pred_check_branch
      %45 = sbr.rel (0) target = $region17
    $region16: #{tpu_custom_call.1} parent=1 // pred_region
      %47 = dma.done [#allocation3], 16
    $region17: #{tpu_custom_call.1} parent=1 // pred_fallthru
      _
    // Predicated region
    $region18: #{tpu_custom_call.1} parent=1 // pred_check
      _
    $region19: #{tpu_custom_call.1} parent=1 // pred_check_branch
      %49 = sbr.rel (0) target = $region21
    $region20: #{tpu_custom_call.1} parent=1 // pred_region
      %51 = dma.done [#allocation6], 64
    $region21: #{tpu_custom_call.1} parent=1 // pred_fallthru
      _
    // Predicated region
    $region22: #{tpu_custom_call.1} parent=1 // pred_check
      _
    $region23: #{tpu_custom_call.1} parent=1 // pred_check_branch
      %53 = sbr.rel (0) target = $region25
    $region24: #{tpu_custom_call.1} parent=1 // pred_region
      %55 = dma.done [#allocation6], 64
    $region25: #{tpu_custom_call.1} parent=1 // pred_fallthru
      _
    %v56 = vld [vmem:[#allocation7] sm:$0xf]
    %v57 = vmax.f32 %v56, -4.0
    %v58 = vmin.f32 %v57, 10.0
    %v59 = vsub.f32 0.0, %v58
    %v60 = vmul.f32 %v59, 1.442695
    %v61 = vpow.pop %v60
    %v62 = vsub.f32 0.0, %v61
    %v63 = vmul.f32 %v62, 1.442695
    %v64 = vpow.pop %v63
    %v65 = vsub.f32 0.0, %v64
    %v66 = vadd.f32 %v65, 1.0
    %v67 = vlog2.pop %v66
    %v68 = vmul.f32 %v67, 0.6931472
    %v69 = vmul.f32 -0.5, %v65
    %v70 = vadd.f32 %v69, 1.0
    %v71 = vmul.f32 %v70, %v65
    %v72 = vand.u32 2147483647, %v65
    %vm73 = vcmp.lt.f32.partialorder %v72, 0.0004427343
    %v74 = vsel %vm73, %v71, %v68
    %v75 = vsub.f32 0.0, %v74
    %v76 = vld [vmem:[#allocation5] sm:$0xf]
    %v77 = vld [vmem:[#allocation2] sm:$0x1]
    %v78 = vlaneseq
    %v79 = vand.u32 %v78, 127
    %80 = vset.pattern.permute.xlu0 0
    %81 = vperm.xlu0 %80, %v76
    %v82 = vpop.permute.xlu0 %81
    %vm83 = vcmp.ge.s32.totalorder %v79, 32
    %84 = vset.pattern.permute.xlu0 1
    %85 = vperm.xlu0 %84, %v76
    %v86 = vpop.permute.xlu0 %85
    %v87 = vsel %vm83, %v86, %v82
    %vm88 = vcmp.ge.s32.totalorder %v79, 64
    %89 = vset.pattern.permute.xlu0 2
    %90 = vperm.xlu0 %89, %v76
    %v91 = vpop.permute.xlu0 %90
    %v92 = vsel %vm88, %v91, %v87
    %vm93 = vcmp.ge.s32.totalorder %v79, 96
    %94 = vset.pattern.permute.xlu0 3
    %95 = vperm.xlu0 %94, %v76
    %v96 = vpop.permute.xlu0 %95
    %v97 = vsel %vm93, %v96, %v92
    %v98 = vperm.slane %v77, 0
    %vm99 = vcmp.eq.s32.totalorder %v97, %v98
    %vm100 = vcmp.ge.s32.totalorder %v97, 0
    %v101 = vsel %vm99, %v61, %v75
    %v102 = vsel %vm100, %v101, 0.0
    %vm103 = vcmask 1043456
    %v104 = vsel %vm103, %v102, 0.0
    %105 = vadd.xlane.f32.xlu0 %v104
    %v106 = vpop.xlane.xlu0 %105
    %v107 = vrot.slane %v106, 4
    %v108 = vadd.f32 %v106, %v107
    %v109 = vrot.slane %v108, 2
    %v110 = vadd.f32 %v108, %v109
    %v111 = vrot.slane %v110, 1
    %v112 = vadd.f32 %v110, %v111
    %s113 = vtos %v112
    %s114 = scalar_lea.smem [#allocation8], 0
    %115 = sst [smem:[%s114]] %s113
    // Predicated region
    $region26: #{tpu_custom_call.1} parent=1 // pred_check
      _
    $region27: #{tpu_custom_call.1} parent=1 // pred_check_branch
      %117 = sbr.rel (0) target = $region29
    $region28: #{tpu_custom_call.1} parent=1 // pred_region
      %119 = vsyncadd [#allocation4], 0
      %s121 = sshll.u32 %s3, 4
      %s122 = int_to_ptr.hbm [resolvable:$true] %s121
      %124 = dma.smem_to_hbm [#allocation8], 16, %s122, [#allocation4]
    $region29: #{tpu_custom_call.1} parent=1 // pred_fallthru
      _
    // Predicated region
    $region30: #{tpu_custom_call.1} parent=1 // pred_check
      _
    $region31: #{tpu_custom_call.1} parent=1 // pred_check_branch
      %126 = sbr.rel (0) target = $region33
    $region32: #{tpu_custom_call.1} parent=1 // pred_region
      %128 = dma.done [#allocation4], 16
    $region33: #{tpu_custom_call.1} parent=1 // pred_fallthru
      _
    %129 = sfence
    %130 = vsyncpa [#allocation3], 1
    %131 = vsyncpa [#allocation6], 1
    %132 = vsyncpa [#allocation4], 1

</llo_original>
